<compile_context>
chip_gen: v7x
topology: tpu7x:2x2x1
jax: 0.10.0
libtpu: 0.0.40
codegen_flags: <defaults>
</compile_context>

<pallas_src>
import functools

import jax
import jax.numpy as jnp
import numpy as np
from jax.experimental import pallas as pl
from jax.experimental.pallas import tpu as pltpu


# ----------------------------------------------------------------------------
# Pallas kernel: similarity MLP + attention softmax + weighted combination
# Processes TB queries per grid step, fully vectorized.
# ----------------------------------------------------------------------------
def _fewshot_kernel(feat_ref, wpack_ref, out_ref, *, f, a, k):
    """feat_ref : (TB, k, 2f + 1 + a)   [support_emb || query_emb || iou || att_emb]
       wpack_ref: (2f + 2, f + f//2 + 1) packed SimilarityModule weights + biases
       out_ref  : (1, 1, TB)            lane-dense per-query sigmoid outputs
    """
    tb = feat_ref.shape[0]
    two_f = 2 * f
    h2sz = f // 2
    neg_slope = jnp.float32(0.01)  # torch.nn.LeakyReLU default

    feat = feat_ref[...]                                          # (TB, k, Dtot)
    x = feat[:, :, :two_f].reshape(tb * k, two_f)                 # (TB*k, 2F)
    iou = feat[:, :, two_f:two_f + 1].reshape(tb * k, 1)          # (TB*k, 1)
    att = feat[:, :, two_f + 1:]                                  # (TB, k, A)

    wp = wpack_ref[...]
    w1 = wp[:two_f, :f]                                           # (2F, F)
    b1 = wp[two_f:two_f + 1, :f]                                  # (1, F)
    w2 = wp[:f, f:f + h2sz]                                       # (F, F/2)
    b2 = wp[two_f:two_f + 1, f:f + h2sz]                          # (1, F/2)
    w3t = wp[two_f + 1:two_f + 2, :h2sz]                          # (1, F/2)  (w3^T)
    b3 = wp[two_f:two_f + 1, f + h2sz:f + h2sz + 1]               # (1, 1)

    # ---- SimilarityModule MLP (layers 1-2 on MXU; N=1 layer 3 on VPU) -------
    h1 = jnp.dot(x, w1, preferred_element_type=jnp.float32) + b1
    h1 = jnp.where(h1 > 0, h1, neg_slope * h1)
    h2 = jnp.dot(h1, w2, preferred_element_type=jnp.float32) + b2
    h2 = jnp.where(h2 > 0, h2, neg_slope * h2)
    h3 = jnp.sum(h2 * w3t, axis=-1, keepdims=True) + b3           # (TB*k, 1)
    sim = (jax.nn.sigmoid(h3) + iou).reshape(tb, k)               # (TB, k)

    # ---- AttentionModule: softmax_k( att_i . sum_j att_j )  (mat-vec form) --
    row_sum = jnp.sum(att, axis=1, keepdims=True)                 # (TB, 1, A)
    dot_sum = jnp.sum(att * row_sum, axis=-1)                     # (TB, k)
    m = jnp.max(dot_sum, axis=-1, keepdims=True)
    e = jnp.exp(dot_sum - m)
    att_w = e / jnp.sum(e, axis=-1, keepdims=True)                # softmax over k

    # ---- final weighted dot product + sigmoid --------------------------------
    out = jax.nn.sigmoid(jnp.sum(att_w * sim, axis=-1))           # (TB,)
    out_ref[...] = out.reshape(1, 1, tb)


def attention_fewshot_pallas(feat, wpack, *, tb, f, a, k):
    """feat: (B, k, 2f+1+a) packed per-query features; wpack: packed weights."""
    B = feat.shape[0]
    assert B % tb == 0, "batch must be a multiple of the per-step tile"
    nb = B // tb
    dtot = feat.shape[-1]
    kern = functools.partial(_fewshot_kernel, f=f, a=a, k=k)
    out = pl.pallas_call(
        kern,
        out_shape=jax.ShapeDtypeStruct((nb, 1, tb), jnp.float32),
        grid=(nb,),
        in_specs=[
            pl.BlockSpec((tb, k, dtot), lambda i: (i, 0, 0)),     # per-step queries
            pl.BlockSpec(wpack.shape, lambda i: (0, 0)),          # weights resident
        ],
        out_specs=pl.BlockSpec((1, 1, tb), lambda i: (i, 0, 0)),  # lane-dense output
        compiler_params=pltpu.CompilerParams(
            dimension_semantics=("parallel",)),                   # v7x: 2 TCs
    )(feat, wpack)
    return out.reshape(B)


# ----------------------------------------------------------------------------
# Parameter setup, weight packing, host-side glue (gathers, concat, IoU table)
# ----------------------------------------------------------------------------
def init_params(key, n_movies, attention_factor, similarity_factor):
    ks = jax.random.split(key, 8)
    f = similarity_factor
    return {
        "att_table": jax.random.normal(ks[0], (n_movies, attention_factor), jnp.float32),
        "sim_table": jax.random.normal(ks[1], (n_movies, f), jnp.float32),
        "w1": jax.random.normal(ks[2], (2 * f, f), jnp.float32) * 0.1,
        "b1": jax.random.normal(ks[3], (f,), jnp.float32) * 0.1,
        "w2": jax.random.normal(ks[4], (f, f // 2), jnp.float32) * 0.1,
        "b2": jax.random.normal(ks[5], (f // 2,), jnp.float32) * 0.1,
        "w3": jax.random.normal(ks[6], (f // 2, 1), jnp.float32) * 0.1,
        "b3": jax.random.normal(ks[7], (1,), jnp.float32) * 0.1,
    }


def pack_weights(params, f):
    """Pack all SimilarityModule weights/biases into one small f32 slab."""
    h2 = f // 2
    wp = jnp.zeros((2 * f + 2, f + h2 + 1), jnp.float32)
    wp = wp.at[:2 * f, :f].set(params["w1"])
    wp = wp.at[2 * f, :f].set(params["b1"])
    wp = wp.at[:f, f:f + h2].set(params["w2"])
    wp = wp.at[2 * f, f:f + h2].set(params["b2"])
    wp = wp.at[2 * f + 1, :h2].set(params["w3"][:, 0])   # store w3 transposed (row)
    wp = wp.at[2 * f, f + h2].set(params["b3"][0])
    return wp


def make_iou_tensor(pos_mv_dict, queries, support_sets):
    """Host-side IoU computation (mirrors SimilarityFeeder.makeIoUtensor)."""
    # TODO(synk): dict/set IoU lookups are inherently host-side Python; no Pallas equivalent.
    q = np.asarray(queries)
    s = np.asarray(support_sets)
    vals = np.zeros(s.shape, np.float32)
    for b in range(s.shape[0]):
        for j in range(s.shape[1]):
            try:
                qs = pos_mv_dict[int(q[b])]["userSet"]
                ss = pos_mv_dict[int(s[b, j])]["userSet"]
                inter = len(qs.intersection(ss))
                ql = pos_mv_dict[int(q[b])]["size"]
                sl = pos_mv_dict[int(s[b, j])]["size"]
                vals[b, j] = inter / (ql + sl - inter)
            except Exception:
                vals[b, j] = 0.0
    return jnp.asarray(vals)[..., None]                           # (B, k, 1)


def build_features(params, pos_mv_dict, queries, support_sets):
    """Embedding gathers + concat into one packed per-query feature tensor."""
    B, k = support_sets.shape
    f = params["sim_table"].shape[1]
    sup = params["sim_table"][support_sets]                       # (B, k, F)
    qry = jnp.broadcast_to(params["sim_table"][queries][:, None, :], (B, k, f))
    iou = make_iou_tensor(pos_mv_dict, queries, support_sets)     # (B, k, 1)
    att = params["att_table"][support_sets]                       # (B, k, A)
    return jnp.concatenate([sup, qry, iou, att], axis=-1)         # (B, k, 2F+1+A)


def attention_fewshot_forward(params, pos_mv_dict, queries, support_sets, *, tb=8):
    f = params["sim_table"].shape[1]
    a = params["att_table"].shape[1]
    k = support_sets.shape[1]
    feat = build_features(params, pos_mv_dict, queries, support_sets)
    wpack = pack_weights(params, f)
    return attention_fewshot_pallas(feat, wpack, tb=tb, f=f, a=a, k=k)


# ----------------------------------------------------------------------------
# Pure-JAX reference (mirrors the PyTorch module exactly, Gram-matrix form)
# ----------------------------------------------------------------------------
def reference_forward(params, pos_mv_dict, queries, support_sets):
    B, k = support_sets.shape
    f = params["sim_table"].shape[1]
    att = params["att_table"][support_sets]                       # (B, k, A)
    sup = params["sim_table"][support_sets]
    qry = jnp.broadcast_to(params["sim_table"][queries][:, None, :], (B, k, f))
    cat = jnp.concatenate([sup, qry], axis=-1)                    # (B, k, 2F)
    iou = make_iou_tensor(pos_mv_dict, queries, support_sets)     # (B, k, 1)

    def lrelu(x):
        return jnp.where(x > 0, x, 0.01 * x)

    h1 = lrelu(cat @ params["w1"] + params["b1"])
    h2 = lrelu(h1 @ params["w2"] + params["b2"])
    sim = jax.nn.sigmoid(h2 @ params["w3"] + params["b3"]) + iou  # (B, k, 1)

    gram = jnp.einsum("bid,bjd->bij", att, att)                   # (B, k, k)
    att_w = jax.nn.softmax(jnp.sum(gram, axis=-1), axis=-1)       # (B, k)
    return jax.nn.sigmoid(jnp.sum(att_w * sim[..., 0], axis=-1))  # (B,)


if __name__ == "__main__":
    key = jax.random.PRNGKey(0)

    n_movies = 64
    attention_factor = 32
    similarity_factor = 8
    k = 8     # support set size
    B = 16    # number of queries (batched)
    TB = 8    # queries per grid step

    params = init_params(key, n_movies, attention_factor, similarity_factor)

    # Synthetic pos_mv_dict (movieId -> user interaction sets) for IoU values.
    pos_mv_dict = {
        m: {"size": 3 + (m % 5), "userSet": set(range(m % 7, m % 7 + 3 + (m % 5)))}
        for m in range(n_movies)
    }

    kq, ks = jax.random.split(jax.random.PRNGKey(0))
    queries = jax.random.randint(kq, (B,), 0, n_movies, dtype=jnp.int32)
    support_sets = jax.random.randint(ks, (B, k), 0, n_movies, dtype=jnp.int32)

    out = attention_fewshot_forward(params, pos_mv_dict, queries, support_sets, tb=TB)
    out = jax.block_until_ready(out)

    ref = reference_forward(params, pos_mv_dict, queries, support_sets)
    assert out.shape == (B,)
    assert jnp.allclose(out, ref, atol=1e-4, rtol=1e-4), (out, ref)

    print("KERNEL_OK")
</pallas_src>

<mosaic_0001>
module attributes {stable_mosaic.version = 11 : i64} {
  func.func @_fewshot_kernel(%arg0: i32, %arg1: memref<8x8x49xf32, #tpu.memory_space<vmem>>, %arg2: memref<18x13xf32, #tpu.memory_space<vmem>>, %arg3: memref<1x1x8xf32, #tpu.memory_space<vmem>>) attributes {dimension_semantics = [#tpu.dimension_semantics<parallel>], iteration_bounds = array<i64: 2>, scalar_prefetch = 0 : i64, scratch_operands = 0 : i64, tpu.core_type = #tpu.core_type<tc>, window_params = [{transform_indices = @transform_0, window_bounds = array<i64: 8, 8, 49>}, {pipeline_mode = #tpu.pipeline_mode<synchronous>, transform_indices = @transform_1, window_bounds = array<i64: 18, 13>}, {transform_indices = @transform_2, window_bounds = array<i64: 1, 1, 8>}]} {
    %c0 = arith.constant 0 : index
    %c0_0 = arith.constant 0 : index
    %c0_1 = arith.constant 0 : index
    %0 = vector.load %arg1[%c0, %c0_0, %c0_1] : memref<8x8x49xf32, #tpu.memory_space<vmem>>, vector<8x8x49xf32>
    %1 = vector.extract_strided_slice %0 {offsets = [0, 0, 0], sizes = [8, 8, 16], strides = [1, 1, 1]} : vector<8x8x49xf32> to vector<8x8x16xf32>
    %2 = vector.shape_cast %1 : vector<8x8x16xf32> to vector<64x16xf32>
    %3 = vector.extract_strided_slice %0 {offsets = [0, 0, 16], sizes = [8, 8, 1], strides = [1, 1, 1]} : vector<8x8x49xf32> to vector<8x8x1xf32>
    %4 = vector.shape_cast %3 : vector<8x8x1xf32> to vector<64x1xf32>
    %5 = vector.extract_strided_slice %0 {offsets = [0, 0, 17], sizes = [8, 8, 32], strides = [1, 1, 1]} : vector<8x8x49xf32> to vector<8x8x32xf32>
    %c0_2 = arith.constant 0 : index
    %c0_3 = arith.constant 0 : index
    %6 = vector.load %arg2[%c0_2, %c0_3] : memref<18x13xf32, #tpu.memory_space<vmem>>, vector<18x13xf32>
    %7 = vector.extract_strided_slice %6 {offsets = [0, 0], sizes = [16, 8], strides = [1, 1]} : vector<18x13xf32> to vector<16x8xf32>
    %8 = vector.extract_strided_slice %6 {offsets = [16, 0], sizes = [1, 8], strides = [1, 1]} : vector<18x13xf32> to vector<1x8xf32>
    %9 = vector.extract_strided_slice %6 {offsets = [0, 8], sizes = [8, 4], strides = [1, 1]} : vector<18x13xf32> to vector<8x4xf32>
    %10 = vector.extract_strided_slice %6 {offsets = [16, 8], sizes = [1, 4], strides = [1, 1]} : vector<18x13xf32> to vector<1x4xf32>
    %11 = vector.extract_strided_slice %6 {offsets = [17, 0], sizes = [1, 4], strides = [1, 1]} : vector<18x13xf32> to vector<1x4xf32>
    %12 = vector.extract_strided_slice %6 {offsets = [16, 12], sizes = [1, 1], strides = [1, 1]} : vector<18x13xf32> to vector<1x1xf32>
    %cst = arith.constant dense<0.000000e+00> : vector<64x8xf32>
    %13 = tpu.matmul %2, %7, %cst {dimension_numbers = #tpu.dot_dimension_numbers<[1], [0], [0], [1], [0, 0, 1, 1], [], []>} : vector<64x16xf32>, vector<16x8xf32>, vector<64x8xf32> -> vector<64x8xf32>
    %14 = vector.broadcast %8 : vector<1x8xf32> to vector<64x8xf32>
    %15 = arith.addf %13, %14 : vector<64x8xf32>
    %cst_4 = arith.constant 0.000000e+00 : f32
    %16 = vector.broadcast %cst_4 : f32 to vector<64x8xf32>
    %17 = arith.cmpf ogt, %15, %16 : vector<64x8xf32>
    %cst_5 = arith.constant 0.00999999977 : f32
    %18 = vector.broadcast %cst_5 : f32 to vector<64x8xf32>
    %19 = arith.mulf %18, %15 : vector<64x8xf32>
    %20 = arith.select %17, %15, %19 : vector<64x8xi1>, vector<64x8xf32>
    %cst_6 = arith.constant dense<0.000000e+00> : vector<64x4xf32>
    %21 = tpu.matmul %20, %9, %cst_6 {dimension_numbers = #tpu.dot_dimension_numbers<[1], [0], [0], [1], [0, 0, 1, 1], [], []>} : vector<64x8xf32>, vector<8x4xf32>, vector<64x4xf32> -> vector<64x4xf32>
    %22 = vector.broadcast %10 : vector<1x4xf32> to vector<64x4xf32>
    %23 = arith.addf %21, %22 : vector<64x4xf32>
    %cst_7 = arith.constant 0.000000e+00 : f32
    %24 = vector.broadcast %cst_7 : f32 to vector<64x4xf32>
    %25 = arith.cmpf ogt, %23, %24 : vector<64x4xf32>
    %cst_8 = arith.constant 0.00999999977 : f32
    %26 = vector.broadcast %cst_8 : f32 to vector<64x4xf32>
    %27 = arith.mulf %26, %23 : vector<64x4xf32>
    %28 = arith.select %25, %23, %27 : vector<64x4xi1>, vector<64x4xf32>
    %29 = vector.broadcast %11 : vector<1x4xf32> to vector<64x4xf32>
    %30 = arith.mulf %28, %29 : vector<64x4xf32>
    %cst_9 = arith.constant dense<0.000000e+00> : vector<64xf32>
    %31 = vector.multi_reduction <add>, %30, %cst_9 [1] : vector<64x4xf32> to vector<64xf32>
    %32 = vector.shape_cast %31 : vector<64xf32> to vector<64x1xf32>
    %33 = vector.broadcast %12 : vector<1x1xf32> to vector<64x1xf32>
    %34 = arith.addf %32, %33 : vector<64x1xf32>
    %35 = arith.negf %34 : vector<64x1xf32>
    %36 = math.exp %35 : vector<64x1xf32>
    %cst_10 = arith.constant 1.000000e+00 : f32
    %37 = vector.broadcast %cst_10 : f32 to vector<64x1xf32>
    %38 = arith.addf %37, %36 : vector<64x1xf32>
    %39 = arith.divf %37, %38 : vector<64x1xf32>
    %40 = arith.addf %39, %4 : vector<64x1xf32>
    %41 = vector.shape_cast %40 : vector<64x1xf32> to vector<8x8xf32>
    %cst_11 = arith.constant dense<0.000000e+00> : vector<8x32xf32>
    %42 = vector.multi_reduction <add>, %5, %cst_11 [1] : vector<8x8x32xf32> to vector<8x32xf32>
    %43 = vector.shape_cast %42 : vector<8x32xf32> to vector<8x1x32xf32>
    %44 = vector.broadcast %43 : vector<8x1x32xf32> to vector<8x8x32xf32>
    %45 = arith.mulf %5, %44 : vector<8x8x32xf32>
    %cst_12 = arith.constant dense<0.000000e+00> : vector<8x8xf32>
    %46 = vector.multi_reduction <add>, %45, %cst_12 [2] : vector<8x8x32xf32> to vector<8x8xf32>
    %cst_13 = arith.constant dense<0xFF800000> : vector<8xf32>
    %47 = vector.multi_reduction <maximumf>, %46, %cst_13 [1] : vector<8x8xf32> to vector<8xf32>
    %48 = vector.shape_cast %47 : vector<8xf32> to vector<8x1xf32>
    %49 = vector.broadcast %48 : vector<8x1xf32> to vector<8x8xf32>
    %50 = arith.subf %46, %49 : vector<8x8xf32>
    %51 = math.exp %50 : vector<8x8xf32>
    %cst_14 = arith.constant dense<0.000000e+00> : vector<8xf32>
    %52 = vector.multi_reduction <add>, %51, %cst_14 [1] : vector<8x8xf32> to vector<8xf32>
    %53 = vector.shape_cast %52 : vector<8xf32> to vector<8x1xf32>
    %54 = vector.broadcast %53 : vector<8x1xf32> to vector<8x8xf32>
    %55 = arith.divf %51, %54 : vector<8x8xf32>
    %56 = arith.mulf %55, %41 : vector<8x8xf32>
    %cst_15 = arith.constant dense<0.000000e+00> : vector<8xf32>
    %57 = vector.multi_reduction <add>, %56, %cst_15 [1] : vector<8x8xf32> to vector<8xf32>
    %58 = arith.negf %57 : vector<8xf32>
    %59 = math.exp %58 : vector<8xf32>
    %cst_16 = arith.constant 1.000000e+00 : f32
    %60 = vector.broadcast %cst_16 : f32 to vector<8xf32>
    %61 = arith.addf %60, %59 : vector<8xf32>
    %62 = arith.divf %60, %61 : vector<8xf32>
    %63 = vector.shape_cast %62 : vector<8xf32> to vector<1x1x8xf32>
    %c0_17 = arith.constant 0 : index
    %c0_18 = arith.constant 0 : index
    %c0_19 = arith.constant 0 : index
    %64 = vector.load %arg3[%c0_17, %c0_18, %c0_19] : memref<1x1x8xf32, #tpu.memory_space<vmem>>, vector<1x1x8xf32>
    tpu.vector_store %arg3[%c0_17, %c0_18, %c0_19], %63 {strides = array<i32>} : memref<1x1x8xf32, #tpu.memory_space<vmem>>, vector<1x1x8xf32>,
    return
  }
  func.func @transform_0(%arg0: i32) -> (i32, i32, i32) {
    %c0_i32 = arith.constant 0 : i32
    %c0_i32_0 = arith.constant 0 : i32
    %c0_i32_1 = arith.constant 0 : i32
    return %arg0, %c0_i32, %c0_i32_0 : i32, i32, i32
  }
  func.func @transform_1(%arg0: i32) -> (i32, i32) {
    %c0_i32 = arith.constant 0 : i32
    %c0_i32_0 = arith.constant 0 : i32
    %c0_i32_1 = arith.constant 0 : i32
    return %c0_i32, %c0_i32_0 : i32, i32
  }
  func.func @transform_2(%arg0: i32) -> (i32, i32, i32) {
    %c0_i32 = arith.constant 0 : i32
    %c0_i32_0 = arith.constant 0 : i32
    %c0_i32_1 = arith.constant 0 : i32
    return %arg0, %c0_i32, %c0_i32_0 : i32, i32, i32
  }
}

</mosaic_0001>

<llo_original>
// kernel: tpu_custom_call.1
$region0: #{tpu_custom_call.1}
  #allocation0 [shape = 'u32[]', space=smem, size = 0x4, offset = 0x4, fixed_abs, tag = 'smem constant byte address 0x4 - core index']
  #allocation1 [shape = 'u32[144,128]{1,0:T(1,128)}', space=vmem, size = 0x12000, scoped, tag = 'internal scratch']
  %s0 = inlined_call_operand.hbm [shape: f32[16,8,49], index: 0, kind: input, shape index: {}]
  %s1 = inlined_call_operand.vmem [shape: f32[18,13], index: 1, kind: input, shape index: {}]
  %s2 = inlined_call_operand.hbm [shape: f32[2,1,8], index: 2, kind: output, shape index: {}]
  %s3 = sld [smem:[#allocation0]]
  $region45: #{tpu_custom_call.1} parent=0
    _
  %s5 = ssub.s32 1, %s3
  %s6 = scalar_select 0, %s5, %s3
  $region1: #{tpu_custom_call.1} parent=0
    #allocation2 [shape = 'u8[65536]{0}', space=vmem, size = 0x10000, scoped, tag = 'input window, operand 0']
    #allocation3 [shape = 's32[2]{0}', space=sflag, size = 0x8, scoped, tag = 'scoped memory for tpu_custom_call.1']
    #allocation4 [shape = 's32[2]{0}', space=sflag, size = 0x8, scoped, tag = 'scoped memory for tpu_custom_call.1']
    #allocation5 [shape = 'u8[1024]{0}', space=vmem, size = 0x400, scoped, tag = 'output window, operand 0']
    %7 = vsyncpa [#allocation3], 0
    %s8 = scalar_lea.sflag [#allocation3], 1
    %9 = vsyncpa %s8, 0
    %10 = vsyncpa [#allocation4], 0
    %s11 = scalar_lea.sflag [#allocation4], 1
    %12 = vsyncpa %s11, 0
    loop: start=0, step=1, limit=4
    $region2: #{tpu_custom_call.1} parent=1 // loop_pre_header
      _
    $region3: #{tpu_custom_call.1} parent=1 // loop_header
      %s14 = sphi 0, %s18
      %p15 = scmp.ge.s32.totalorder %s14, 4
      %s24 = sphi 0, %s26
      %s27 = sphi 0, %s24
      %s28 = sphi 0, %s27
      %s44 = sphi 0, %s28
      %s48 = sphi 0, %s48
      %s50 = sphi 0, %s48
      %s51 = sphi 0, %s50
      %s65 = sphi 0, %s51
      %s71 = sphi 0, %s73
      %s74 = sphi 0, %s71
      %s75 = sphi 0, %s74
      %s91 = sphi 0, %s75
    $region4: #{tpu_custom_call.1} parent=1 // loop_header_branch
      %17 = sbr.rel (%p15) target = $region8
    $region5: #{tpu_custom_call.1} parent=1 // loop_body
      %s19 = ssub.s32 %s14, 1
      %s20 = ssub.s32 %s14, 2
      %s21 = sadd.s32 %s14, 1
      %s22 = ssub.s32 %s14, %s21
      %p23 = scmp.eq.s32.totalorder %s22, 0
      %s25 = sadd.s32 %s24, 1
      %s26 = scalar_select %p23, %s24, %s25
      %p29 = pneg %p23
      %p30 = scmp.eq.s32.totalorder %s14, 1
      %p31 = por %p29, %p30
      %p32 = scmp.ne.s32.totalorder %s24, %s27
      %p33 = scmp.eq.s32.totalorder %s14, 0
      %p34 = por %p32, %p33
      %p35 = scmp.ne.s32.totalorder %s24, %s27
      %p36 = scmp.eq.s32.totalorder %s19, 1
      %p37 = por %p35, %p36
      %p38 = scmp.ne.s32.totalorder %s27, %s28
      %p39 = scmp.eq.s32.totalorder %s19, 0
      %p40 = por %p38, %p39
      %p41 = scmp.ne.s32.totalorder %s27, %s28
      %p42 = scmp.eq.s32.totalorder %s20, 1
      %p43 = por %p41, %p42
      %p45 = scmp.ne.s32.totalorder %s28, %s44
      %p46 = scmp.eq.s32.totalorder %s20, 0
      %p47 = por %p45, %p46
      %s49 = sadd.s32 %s48, 1
      %p52 = scmp.eq.s32.totalorder %s14, 1
      %p53 = scmp.ne.s32.totalorder %s48, %s50
      %p54 = scmp.eq.s32.totalorder %s14, 0
      %p55 = por %p53, %p54
      %p56 = scmp.ne.s32.totalorder %s48, %s50
      %p57 = scmp.eq.s32.totalorder %s19, 1
      %p58 = por %p56, %p57
      %p59 = scmp.ne.s32.totalorder %s50, %s51
      %p60 = scmp.eq.s32.totalorder %s19, 0
      %p61 = por %p59, %p60
      %p62 = scmp.ne.s32.totalorder %s50, %s51
      %p63 = scmp.eq.s32.totalorder %s20, 1
      %p64 = por %p62, %p63
      %p66 = scmp.ne.s32.totalorder %s51, %s65
      %p67 = scmp.eq.s32.totalorder %s20, 0
      %p68 = por %p66, %p67
      %s69 = ssub.s32 %s14, %s21
      %p70 = scmp.eq.s32.totalorder %s69, 0
      %s72 = sadd.s32 %s71, 1
      %s73 = scalar_select %p70, %s71, %s72
      %p76 = pneg %p70
      %p77 = scmp.eq.s32.totalorder %s14, 1
      %p78 = por %p76, %p77
      %p79 = scmp.ne.s32.totalorder %s71, %s74
      %p80 = scmp.eq.s32.totalorder %s14, 0
      %p81 = por %p79, %p80
      %p82 = scmp.ne.s32.totalorder %s71, %s74
      %p83 = scmp.eq.s32.totalorder %s19, 1
      %p84 = por %p82, %p83
      %p85 = scmp.ne.s32.totalorder %s74, %s75
      %p86 = scmp.eq.s32.totalorder %s19, 0
      %p87 = por %p85, %p86
      %p88 = scmp.ne.s32.totalorder %s74, %s75
      %p89 = scmp.eq.s32.totalorder %s20, 1
      %p90 = por %p88, %p89
      %p92 = scmp.ne.s32.totalorder %s75, %s91
      %p93 = scmp.eq.s32.totalorder %s20, 0
      %p94 = por %p92, %p93
      %p95 = scmp.le.s32.totalorder 1, %s14
      %p96 = scmp.lt.s32.totalorder %s14, 3
      %p97 = pnand %p95, %p96
      %p98 = pneg %p97
      // Predicated region
      $region9: #{tpu_custom_call.1} parent=5 // pred_check
        _
      $region10: #{tpu_custom_call.1} parent=5 // pred_check_branch
        %100 = sbr.rel (%p97) target = $region12
      $region11: #{tpu_custom_call.1} parent=5 // pred_region
        %s101 = ssub.s32 %s14, 1
        // Predicated region
        $region13: #{tpu_custom_call.1} parent=11 // pred_check
          %p102 = pneg %p61
        $region14: #{tpu_custom_call.1} parent=11 // pred_check_branch
          %104 = sbr.rel (%p102) target = $region16
        $region15: #{tpu_custom_call.1} parent=11 // pred_region
          _
        $region16: #{tpu_custom_call.1} parent=11 // pred_fallthru
          _
      $region12: #{tpu_custom_call.1} parent=5 // pred_fallthru
        _
      %p105 = scmp.lt.s32.totalorder %s14, 2
      // Predicated region
      $region17: #{tpu_custom_call.1} parent=5 // pred_check
        %p106 = pneg %p105
      $region18: #{tpu_custom_call.1} parent=5 // pred_check_branch
        %108 = sbr.rel (%p106) target = $region20
      $region19: #{tpu_custom_call.1} parent=5 // pred_region
        // Predicated region
        $region21: #{tpu_custom_call.1} parent=19 // pred_check
          %p109 = pneg %p34
        $region22: #{tpu_custom_call.1} parent=19 // pred_check_branch
          %111 = sbr.rel (%p109) target = $region24
        $region23: #{tpu_custom_call.1} parent=19 // pred_region
          %s112 = sand.u32 %s24, 1
          %s113 = scalar_lea.sflag [#allocation3], %s112
          %s114 = sand.u32 %s24, 1
          %s115 = smul.addr %s114, 64
          %s116 = scalar_lea.vmem [#allocation2], %s115
          %s117 = smul.u32 8, %s14
          %s119 = ssub.s32 1024, 1024
          %120 = vsyncadd %s113, %s119
          %s121 = smul.addr %s117, 128
          %s122 = scalar_lea.hbm %s0, %s121
          %s123 = sshll.u32 %s116, 4
          %s124 = int_to_ptr.vmem [resolvable:$true] %s123
          %129 = dma.hbm_to_vmem [thread:$0]  %s122, 1024, %s124, %s113, 128, 128, 8
        $region24: #{tpu_custom_call.1} parent=19 // pred_fallthru
          _
      $region20: #{tpu_custom_call.1} parent=5 // pred_fallthru
        _
      %p130 = scmp.le.s32.totalorder 1, %s14
      %p131 = scmp.lt.s32.totalorder %s14, 3
      %p132 = pnand %p130, %p131
      %p133 = pneg %p132
      // Predicated region
      $region25: #{tpu_custom_call.1} parent=5 // pred_check
        _
      $region26: #{tpu_custom_call.1} parent=5 // pred_check_branch
        %135 = sbr.rel (%p132) target = $region28
      $region27: #{tpu_custom_call.1} parent=5 // pred_region
        %s136 = ssub.s32 %s14, 1
        %s137 = sand.u32 %s27, 1
        %s138 = scalar_lea.sflag [#allocation3], %s137
        %s139 = sand.u32 %s27, 1
        %s140 = smul.addr %s139, 64
        %s141 = scalar_lea.vmem [#allocation2], %s140
        // Predicated region
        $region29: #{tpu_custom_call.1} parent=27 // pred_check
          %p142 = pneg %p40
        $region30: #{tpu_custom_call.1} parent=27 // pred_check_branch
          %144 = sbr.rel (%p142) target = $region32
        $region31: #{tpu_custom_call.1} parent=27 // pred_region
          %145 = dma.done %s138, 1024
        $region32: #{tpu_custom_call.1} parent=27 // pred_fallthru
          _
        %s146 = sand.u32 %s27, 1
        %s147 = scalar_lea.sflag [#allocation3], %s146
        %s148 = sand.u32 %s27, 1
        %s149 = smul.addr %s148, 64
        %s150 = scalar_lea.vmem [#allocation2], %s149
        %p151 = pneg %p40
        %p152 = pneg %p37
        %p153 = pneg %p61
        %p154 = pneg %p58
        %p155 = pneg %p87
        %p156 = pneg %p84
        %s157 = sand.u32 %s74, 1
        %s158 = scalar_lea.sflag [#allocation4], %s157
        %s159 = sand.u32 %s74, 1
        %s160 = scalar_lea.vmem [#allocation5], %s159
        %s161 = smul.u32 8, %s19
        %v162 = vld [vmem:[%s141] sm:$0xff]
        %v163 = vld [vmem:[%s141 + $0x8] sm:$0xff]
        %v164 = vld [vmem:[%s141 + $0x10] sm:$0xff]
        %v165 = vld [vmem:[%s141 + $0x18] sm:$0xff]
        %v166 = vld [vmem:[%s141 + $0x20] sm:$0xff]
        %v167 = vld [vmem:[%s141 + $0x28] sm:$0xff]
        %v168 = vld [vmem:[%s141 + $0x30] sm:$0xff]
        %v169 = vld [vmem:[%s141 + $0x38] sm:$0xff]
        %v170 = vld [vmem:[%s1] sm:$0xff]
        %v171 = vld [vmem:[%s1 + $0x8] sm:$0xff]
        %v172 = vld [vmem:[%s1 + $0x10] sm:$0x3]
        %v173 = vlaneseq
        %v174 = vshrl.u32 %v173, 7
        %v175 = vsub.s32 0, %v174
        %v176 = vrot.slane %v172, %v175
        %vm177 = vcmask 130048
        %v179 = vsel %vm177, %v162, 0
        %v182 = vsel %vm177, %v163, 0
        %v185 = vsel %vm177, %v164, 0
        %v188 = vsel %vm177, %v165, 0
        %v191 = vsel %vm177, %v166, 0
        %v194 = vsel %vm177, %v167, 0
        %v197 = vsel %vm177, %v168, 0
        %v200 = vsel %vm177, %v169, 0
        %202 = vmatprep.subr.mxu0 0.0
        %203 = vmatpush1.msra.mxu0 %v170
        %204 = vmatprep.subr.mxu0 0.0
        %205 = vmatpush1.msra.mxu0 %v171
        %206 = vmatprep.subr.mxu0 0.0
        %207 = vmatpush1.msra.mxu0 0.0
        %208 = vmatprep.subr.mxu0 0.0
        %209 = vmatpush1.msra.mxu0 0.0
        %210 = vmatprep.subr.mxu0 0.0
        %211 = vmatpush1.msra.mxu0 0.0
        %212 = vmatprep.subr.mxu0 0.0
        %213 = vmatpush1.msra.mxu0 0.0
        %214 = vmatprep.subr.mxu0 0.0
        %215 = vmatpush1.msra.mxu0 0.0
        %216 = vmatprep.subr.mxu0 0.0
        %217 = vmatpush1.msra.mxu0 0.0
        %218 = vmatprep.subr.mxu0 0.0
        %219 = vmatpush1.msra.mxu0 0.0
        %220 = vmatprep.subr.mxu0 0.0
        %221 = vmatpush1.msra.mxu0 0.0
        %222 = vmatprep.subr.mxu0 0.0
        %223 = vmatpush1.msra.mxu0 0.0
        %224 = vmatprep.subr.mxu0 0.0
        %225 = vmatpush1.msra.mxu0 0.0
        %226 = vmatprep.subr.mxu0 0.0
        %227 = vmatpush1.msra.mxu0 0.0
        %228 = vmatprep.subr.mxu0 0.0
        %229 = vmatpush1.msra.mxu0 0.0
        %230 = vmatprep.subr.mxu0 0.0
        %231 = vmatpush1.msra.mxu0 0.0
        %232 = vmatprep.subr.mxu0 0.0
        %233 = vmatpush1.msra.mxu0 0.0
        %234 = vmatprep.subr.mxu0 0.0
        %235 = vmatpush1.msra.mxu0 0.0
        %236 = vmatprep.subr.mxu0 0.0
        %237 = vmatpush1.msra.mxu0 0.0
        %238 = vmatprep.subr.mxu0 0.0
        %239 = vmatpush1.msra.mxu0 0.0
        %240 = vmatprep.subr.mxu0 0.0
        %241 = vmatpush1.msra.mxu0 0.0
        %242 = vmatprep.subr.mxu0 0.0
        %243 = vmatpush1.msra.mxu0 0.0
        %244 = vmatprep.subr.mxu0 0.0
        %245 = vmatpush1.msra.mxu0 0.0
        %246 = vmatprep.subr.mxu0 0.0
        %247 = vmatpush1.msra.mxu0 0.0
        %248 = vmatprep.subr.mxu0 0.0
        %249 = vmatpush1.msra.mxu0 0.0
        %250 = vmatprep.subr.mxu0 0.0
        %251 = vmatpush1.msra.mxu0 0.0
        %252 = vmatprep.subr.mxu0 0.0
        %253 = vmatpush1.msra.mxu0 0.0
        %254 = vmatprep.subr.mxu0 0.0
        %255 = vmatpush1.msra.mxu0 0.0
        %256 = vmatprep.subr.mxu0 0.0
        %257 = vmatpush1.msra.mxu0 0.0
        %258 = vmatprep.subr.mxu0 0.0
        %259 = vmatpush1.msra.mxu0 0.0
        %260 = vmatprep.subr.mxu0 0.0
        %261 = vmatpush1.msra.mxu0 0.0
        %262 = vmatprep.subr.mxu0 0.0
        %263 = vmatpush1.msra.mxu0 0.0
        %264 = vmatprep.subr.mxu0 0.0
        %265 = vmatpush1.msra.mxu0 0.0
        %266 = vmatprep.mubr.f32.mxu0 0.0
        %267 = vmatmul.mubr.f32.gmra.mrb[0].mxu0 %v179
        %v268 = vpop.f32.mrb[0].mxu0
        %v269 = vadd.f32 %v176, %v268
        %v270 = vpop.f32.mrb[0].mxu0
        %271 = vmatprep.mubr.f32.mxu0 0.0
        %272 = vmatmul.mubr.f32.gmra.mrb[0].mxu0 %v182
        %v273 = vpop.f32.mrb[0].mxu0
        %v274 = vadd.f32 %v176, %v273
        %v275 = vpop.f32.mrb[0].mxu0
        %276 = vmatprep.mubr.f32.mxu0 0.0
        %277 = vmatmul.mubr.f32.gmra.mrb[0].mxu0 %v185
        %v278 = vpop.f32.mrb[0].mxu0
        %v279 = vadd.f32 %v176, %v278
        %v280 = vpop.f32.mrb[0].mxu0
        %281 = vmatprep.mubr.f32.mxu0 0.0
        %282 = vmatmul.mubr.f32.gmra.mrb[0].mxu0 %v188
        %v283 = vpop.f32.mrb[0].mxu0
        %v284 = vadd.f32 %v176, %v283
        %v285 = vpop.f32.mrb[0].mxu0
        %286 = vmatprep.mubr.f32.mxu0 0.0
        %287 = vmatmul.mubr.f32.gmra.mrb[0].mxu0 %v191
        %v288 = vpop.f32.mrb[0].mxu0
        %v289 = vadd.f32 %v176, %v288
        %v290 = vpop.f32.mrb[0].mxu0
        %291 = vmatprep.mubr.f32.mxu0 0.0
        %292 = vmatmul.mubr.f32.gmra.mrb[0].mxu0 %v194
        %v293 = vpop.f32.mrb[0].mxu0
        %v294 = vadd.f32 %v176, %v293
        %v295 = vpop.f32.mrb[0].mxu0
        %296 = vmatprep.mubr.f32.mxu0 0.0
        %297 = vmatmul.mubr.f32.gmra.mrb[0].mxu0 %v197
        %v298 = vpop.f32.mrb[0].mxu0
        %v299 = vadd.f32 %v176, %v298
        %v300 = vpop.f32.mrb[0].mxu0
        %301 = vmatprep.mubr.f32.mxu0 0.0
        %302 = vmatmul.mubr.f32.gmra.mrb[0].mxu0 %v200
        %v303 = vpop.f32.mrb[0].mxu0
        %v304 = vadd.f32 %v176, %v303
        %v305 = vpop.f32.mrb[0].mxu0
        %306 = vdwg.mxu0
        %vm307 = vcmp.gt.f32.partialorder %v269, 0.0
        %vm308 = vcmp.gt.f32.partialorder %v274, 0.0
        %vm309 = vcmp.gt.f32.partialorder %v279, 0.0
        %vm310 = vcmp.gt.f32.partialorder %v284, 0.0
        %vm311 = vcmp.gt.f32.partialorder %v289, 0.0
        %vm312 = vcmp.gt.f32.partialorder %v294, 0.0
        %vm313 = vcmp.gt.f32.partialorder %v299, 0.0
        %vm314 = vcmp.gt.f32.partialorder %v304, 0.0
        %v315 = vmul.f32 %v269, 0.01
        %v316 = vmul.f32 %v274, 0.01
        %v317 = vmul.f32 %v279, 0.01
        %v318 = vmul.f32 %v284, 0.01
        %v319 = vmul.f32 %v289, 0.01
        %v320 = vmul.f32 %v294, 0.01
        %v321 = vmul.f32 %v299, 0.01
        %v322 = vmul.f32 %v304, 0.01
        %v323 = vsel %vm307, %v269, %v315
        %v324 = vsel %vm308, %v274, %v316
        %v325 = vsel %vm309, %v279, %v317
        %v326 = vsel %vm310, %v284, %v318
        %v327 = vsel %vm311, %v289, %v319
        %v328 = vsel %vm312, %v294, %v320
        %v329 = vsel %vm313, %v299, %v321
        %v330 = vsel %vm314, %v304, %v322
        %332 = vrot.lane.b32.xlu0 %v170, 120
        %v333 = vpop.permute.xlu0 %332
        %336 = vrot.lane.b32.xlu0 %v176, 120
        %v337 = vpop.permute.xlu0 %336
        %vm339 = vcmask 64512
        %v341 = vsel %vm339, %v323, 0
        %v344 = vsel %vm339, %v324, 0
        %v347 = vsel %vm339, %v325, 0
        %v350 = vsel %vm339, %v326, 0
        %v353 = vsel %vm339, %v327, 0
        %v356 = vsel %vm339, %v328, 0
        %v359 = vsel %vm339, %v329, 0
        %v362 = vsel %vm339, %v330, 0
        %364 = vmatprep.subr.mxu0 0.0
        %365 = vmatpush1.msra.mxu0 %v333
        %366 = vmatprep.subr.mxu0 0.0
        %367 = vmatpush1.msra.mxu0 0.0
        %368 = vmatprep.subr.mxu0 0.0
        %369 = vmatpush1.msra.mxu0 0.0
        %370 = vmatprep.subr.mxu0 0.0
        %371 = vmatpush1.msra.mxu0 0.0
        %372 = vmatprep.subr.mxu0 0.0
        %373 = vmatpush1.msra.mxu0 0.0
        %374 = vmatprep.subr.mxu0 0.0
        %375 = vmatpush1.msra.mxu0 0.0
        %376 = vmatprep.subr.mxu0 0.0
        %377 = vmatpush1.msra.mxu0 0.0
        %378 = vmatprep.subr.mxu0 0.0
        %379 = vmatpush1.msra.mxu0 0.0
        %380 = vmatprep.subr.mxu0 0.0
        %381 = vmatpush1.msra.mxu0 0.0
        %382 = vmatprep.subr.mxu0 0.0
        %383 = vmatpush1.msra.mxu0 0.0
        %384 = vmatprep.subr.mxu0 0.0
        %385 = vmatpush1.msra.mxu0 0.0
        %386 = vmatprep.subr.mxu0 0.0
        %387 = vmatpush1.msra.mxu0 0.0
        %388 = vmatprep.subr.mxu0 0.0
        %389 = vmatpush1.msra.mxu0 0.0
        %390 = vmatprep.subr.mxu0 0.0
        %391 = vmatpush1.msra.mxu0 0.0
        %392 = vmatprep.subr.mxu0 0.0
        %393 = vmatpush1.msra.mxu0 0.0
        %394 = vmatprep.subr.mxu0 0.0
        %395 = vmatpush1.msra.mxu0 0.0
        %396 = vmatprep.subr.mxu0 0.0
        %397 = vmatpush1.msra.mxu0 0.0
        %398 = vmatprep.subr.mxu0 0.0
        %399 = vmatpush1.msra.mxu0 0.0
        %400 = vmatprep.subr.mxu0 0.0
        %401 = vmatpush1.msra.mxu0 0.0
        %402 = vmatprep.subr.mxu0 0.0
        %403 = vmatpush1.msra.mxu0 0.0
        %404 = vmatprep.subr.mxu0 0.0
        %405 = vmatpush1.msra.mxu0 0.0
        %406 = vmatprep.subr.mxu0 0.0
        %407 = vmatpush1.msra.mxu0 0.0
        %408 = vmatprep.subr.mxu0 0.0
        %409 = vmatpush1.msra.mxu0 0.0
        %410 = vmatprep.subr.mxu0 0.0
        %411 = vmatpush1.msra.mxu0 0.0
        %412 = vmatprep.subr.mxu0 0.0
        %413 = vmatpush1.msra.mxu0 0.0
        %414 = vmatprep.subr.mxu0 0.0
        %415 = vmatpush1.msra.mxu0 0.0
        %416 = vmatprep.subr.mxu0 0.0
        %417 = vmatpush1.msra.mxu0 0.0
        %418 = vmatprep.subr.mxu0 0.0
        %419 = vmatpush1.msra.mxu0 0.0
        %420 = vmatprep.subr.mxu0 0.0
        %421 = vmatpush1.msra.mxu0 0.0
        %422 = vmatprep.subr.mxu0 0.0
        %423 = vmatpush1.msra.mxu0 0.0
        %424 = vmatprep.subr.mxu0 0.0
        %425 = vmatpush1.msra.mxu0 0.0
        %426 = vmatprep.subr.mxu0 0.0
        %427 = vmatpush1.msra.mxu0 0.0
        %428 = vmatprep.mubr.f32.mxu0 0.0
        %429 = vmatmul.mubr.f32.gmra.mrb[0].mxu0 %v341
        %v430 = vpop.f32.mrb[0].mxu0
        %v431 = vadd.f32 %v337, %v430
        %v432 = vpop.f32.mrb[0].mxu0
        %433 = vmatprep.mubr.f32.mxu0 0.0
        %434 = vmatmul.mubr.f32.gmra.mrb[0].mxu0 %v344
        %v435 = vpop.f32.mrb[0].mxu0
        %v436 = vadd.f32 %v337, %v435
        %v437 = vpop.f32.mrb[0].mxu0
        %438 = vmatprep.mubr.f32.mxu0 0.0
        %439 = vmatmul.mubr.f32.gmra.mrb[0].mxu0 %v347
        %v440 = vpop.f32.mrb[0].mxu0
        %v441 = vadd.f32 %v337, %v440
        %v442 = vpop.f32.mrb[0].mxu0
        %443 = vmatprep.mubr.f32.mxu0 0.0
        %444 = vmatmul.mubr.f32.gmra.mrb[0].mxu0 %v350
        %v445 = vpop.f32.mrb[0].mxu0
        %v446 = vadd.f32 %v337, %v445
        %v447 = vpop.f32.mrb[0].mxu0
        %448 = vmatprep.mubr.f32.mxu0 0.0
        %449 = vmatmul.mubr.f32.gmra.mrb[0].mxu0 %v353
        %v450 = vpop.f32.mrb[0].mxu0
        %v451 = vadd.f32 %v337, %v450
        %v452 = vpop.f32.mrb[0].mxu0
        %453 = vmatprep.mubr.f32.mxu0 0.0
        %454 = vmatmul.mubr.f32.gmra.mrb[0].mxu0 %v356
        %v455 = vpop.f32.mrb[0].mxu0
        %v456 = vadd.f32 %v337, %v455
        %v457 = vpop.f32.mrb[0].mxu0
        %458 = vmatprep.mubr.f32.mxu0 0.0
        %459 = vmatmul.mubr.f32.gmra.mrb[0].mxu0 %v359
        %v460 = vpop.f32.mrb[0].mxu0
        %v461 = vadd.f32 %v337, %v460
        %v462 = vpop.f32.mrb[0].mxu0
        %463 = vmatprep.mubr.f32.mxu0 0.0
        %464 = vmatmul.mubr.f32.gmra.mrb[0].mxu0 %v362
        %v465 = vpop.f32.mrb[0].mxu0
        %v466 = vadd.f32 %v337, %v465
        %v467 = vpop.f32.mrb[0].mxu0
        %468 = vdwg.mxu0
        %vm469 = vcmp.gt.f32.partialorder %v431, 0.0
        %vm470 = vcmp.gt.f32.partialorder %v436, 0.0
        %vm471 = vcmp.gt.f32.partialorder %v441, 0.0
        %vm472 = vcmp.gt.f32.partialorder %v446, 0.0
        %vm473 = vcmp.gt.f32.partialorder %v451, 0.0
        %vm474 = vcmp.gt.f32.partialorder %v456, 0.0
        %vm475 = vcmp.gt.f32.partialorder %v461, 0.0
        %vm476 = vcmp.gt.f32.partialorder %v466, 0.0
        %v477 = vmul.f32 %v431, 0.01
        %v478 = vmul.f32 %v436, 0.01
        %v479 = vmul.f32 %v441, 0.01
        %v480 = vmul.f32 %v446, 0.01
        %v481 = vmul.f32 %v451, 0.01
        %v482 = vmul.f32 %v456, 0.01
        %v483 = vmul.f32 %v461, 0.01
        %v484 = vmul.f32 %v466, 0.01
        %v485 = vsel %vm469, %v431, %v477
        %v486 = vsel %vm470, %v436, %v478
        %v487 = vsel %vm471, %v441, %v479
        %v488 = vsel %vm472, %v446, %v480
        %v489 = vsel %vm473, %v451, %v481
        %v490 = vsel %vm474, %v456, %v482
        %v491 = vsel %vm475, %v461, %v483
        %v492 = vsel %vm476, %v466, %v484
        %v493 = vlaneseq
        %v494 = vshrl.u32 %v493, 7
        %v495 = vsub.s32 1, %v494
        %v496 = vrot.slane %v172, %v495
        %v497 = vmul.f32 %v485, %v496
        %v498 = vmul.f32 %v486, %v496
        %v499 = vmul.f32 %v487, %v496
        %v500 = vmul.f32 %v488, %v496
        %v501 = vmul.f32 %v489, %v496
        %v502 = vmul.f32 %v490, %v496
        %v503 = vmul.f32 %v491, %v496
        %v504 = vmul.f32 %v492, %v496
        %vm505 = vcmask 31744
        %v506 = vsel %vm505, %v497, 0.0
        %507 = vadd.xlane.f32.xlu0 %v506
        %v508 = vpop.xlane.xlu0 %507
        %v509 = vsel %vm505, %v498, 0.0
        %510 = vadd.xlane.f32.xlu0 %v509
        %v511 = vpop.xlane.xlu0 %510
        %v512 = vsel %vm505, %v499, 0.0
        %513 = vadd.xlane.f32.xlu0 %v512
        %v514 = vpop.xlane.xlu0 %513
        %v515 = vsel %vm505, %v500, 0.0
        %516 = vadd.xlane.f32.xlu0 %v515
        %v517 = vpop.xlane.xlu0 %516
        %v518 = vsel %vm505, %v501, 0.0
        %519 = vadd.xlane.f32.xlu0 %v518
        %v520 = vpop.xlane.xlu0 %519
        %v521 = vsel %vm505, %v502, 0.0
        %522 = vadd.xlane.f32.xlu0 %v521
        %v523 = vpop.xlane.xlu0 %522
        %v524 = vsel %vm505, %v503, 0.0
        %525 = vadd.xlane.f32.xlu0 %v524
        %v526 = vpop.xlane.xlu0 %525
        %v527 = vsel %vm505, %v504, 0.0
        %528 = vadd.xlane.f32.xlu0 %v527
        %v529 = vpop.xlane.xlu0 %528
        %v530 = vadd.f32 %v508, %v176
        %v531 = vadd.f32 %v511, %v176
        %v532 = vadd.f32 %v514, %v176
        %v533 = vadd.f32 %v517, %v176
        %v534 = vadd.f32 %v520, %v176
        %v535 = vadd.f32 %v523, %v176
        %v536 = vadd.f32 %v526, %v176
        %v537 = vadd.f32 %v529, %v176
        %v538 = vxor.u32 %v530, 2147483648
        %v539 = vxor.u32 %v531, 2147483648
        %v540 = vxor.u32 %v532, 2147483648
        %v541 = vxor.u32 %v533, 2147483648
        %v542 = vxor.u32 %v534, 2147483648
        %v543 = vxor.u32 %v535, 2147483648
        %v544 = vxor.u32 %v536, 2147483648
        %v545 = vxor.u32 %v537, 2147483648
        %v546 = vmul.f32 %v538, 1.442695
        %v547 = vpow.pop %v546
        %v548 = vmul.f32 %v539, 1.442695
        %v549 = vpow.pop %v548
        %v550 = vmul.f32 %v540, 1.442695
        %v551 = vpow.pop %v550
        %v552 = vmul.f32 %v541, 1.442695
        %v553 = vpow.pop %v552
        %v554 = vmul.f32 %v542, 1.442695
        %v555 = vpow.pop %v554
        %v556 = vmul.f32 %v543, 1.442695
        %v557 = vpow.pop %v556
        %v558 = vmul.f32 %v544, 1.442695
        %v559 = vpow.pop %v558
        %v560 = vmul.f32 %v545, 1.442695
        %v561 = vpow.pop %v560
        %v562 = vadd.f32 %v547, 1.0
        %v563 = vadd.f32 %v549, 1.0
        %v564 = vadd.f32 %v551, 1.0
        %v565 = vadd.f32 %v553, 1.0
        %v566 = vadd.f32 %v555, 1.0
        %v567 = vadd.f32 %v557, 1.0
        %v568 = vadd.f32 %v559, 1.0
        %v569 = vadd.f32 %v561, 1.0
        %v570 = vrcp.pop %v562
        %v571 = vmul.f32 1.0, %v570
        %v572 = vrcp.pop %v563
        %v573 = vmul.f32 1.0, %v572
        %v574 = vrcp.pop %v564
        %v575 = vmul.f32 1.0, %v574
        %v576 = vrcp.pop %v565
        %v577 = vmul.f32 1.0, %v576
        %v578 = vrcp.pop %v566
        %v579 = vmul.f32 1.0, %v578
        %v580 = vrcp.pop %v567
        %v581 = vmul.f32 1.0, %v580
        %v582 = vrcp.pop %v568
        %v583 = vmul.f32 1.0, %v582
        %v584 = vrcp.pop %v569
        %v585 = vmul.f32 1.0, %v584
        %586 = vrot.lane.b32.xlu0 %v162, 124
        %v587 = vpop.permute.xlu0 %586
        %588 = vrot.lane.b32.xlu0 %v163, 124
        %v589 = vpop.permute.xlu0 %588
        %590 = vrot.lane.b32.xlu0 %v164, 124
        %v591 = vpop.permute.xlu0 %590
        %592 = vrot.lane.b32.xlu0 %v165, 124
        %v593 = vpop.permute.xlu0 %592
        %594 = vrot.lane.b32.xlu0 %v166, 124
        %v595 = vpop.permute.xlu0 %594
        %596 = vrot.lane.b32.xlu0 %v167, 124
        %v597 = vpop.permute.xlu0 %596
        %598 = vrot.lane.b32.xlu0 %v168, 124
        %v599 = vpop.permute.xlu0 %598
        %600 = vrot.lane.b32.xlu0 %v169, 124
        %v601 = vpop.permute.xlu0 %600
        %v610 = vadd.f32 %v571, %v587
        %v611 = vadd.f32 %v573, %v589
        %v612 = vadd.f32 %v575, %v591
        %v613 = vadd.f32 %v577, %v593
        %v614 = vadd.f32 %v579, %v595
        %v615 = vadd.f32 %v581, %v597
        %v616 = vadd.f32 %v583, %v599
        %v617 = vadd.f32 %v585, %v601
        %vm618 = vcmask 400520
        %v619 = vsel %vm618, %v162, 0.0
        %v620 = vrot.slane %v619, 4
        %v621 = vadd.f32 %v619, %v620
        %v622 = vrot.slane %v621, 2
        %v623 = vadd.f32 %v621, %v622
        %v624 = vrot.slane %v623, 1
        %v625 = vadd.f32 %v623, %v624
        %v626 = vsel %vm618, %v163, 0.0
        %v627 = vrot.slane %v626, 4
        %v628 = vadd.f32 %v626, %v627
        %v629 = vrot.slane %v628, 2
        %v630 = vadd.f32 %v628, %v629
        %v631 = vrot.slane %v630, 1
        %v632 = vadd.f32 %v630, %v631
        %v633 = vsel %vm618, %v164, 0.0
        %v634 = vrot.slane %v633, 4
        %v635 = vadd.f32 %v633, %v634
        %v636 = vrot.slane %v635, 2
        %v637 = vadd.f32 %v635, %v636
        %v638 = vrot.slane %v637, 1
        %v639 = vadd.f32 %v637, %v638
        %v640 = vsel %vm618, %v165, 0.0
        %v641 = vrot.slane %v640, 4
        %v642 = vadd.f32 %v640, %v641
        %v643 = vrot.slane %v642, 2
        %v644 = vadd.f32 %v642, %v643
        %v645 = vrot.slane %v644, 1
        %v646 = vadd.f32 %v644, %v645
        %v647 = vsel %vm618, %v166, 0.0
        %v648 = vrot.slane %v647, 4
        %v649 = vadd.f32 %v647, %v648
        %v650 = vrot.slane %v649, 2
        %v651 = vadd.f32 %v649, %v650
        %v652 = vrot.slane %v651, 1
        %v653 = vadd.f32 %v651, %v652
        %v654 = vsel %vm618, %v167, 0.0
        %v655 = vrot.slane %v654, 4
        %v656 = vadd.f32 %v654, %v655
        %v657 = vrot.slane %v656, 2
        %v658 = vadd.f32 %v656, %v657
        %v659 = vrot.slane %v658, 1
        %v660 = vadd.f32 %v658, %v659
        %v661 = vsel %vm618, %v168, 0.0
        %v662 = vrot.slane %v661, 4
        %v663 = vadd.f32 %v661, %v662
        %v664 = vrot.slane %v663, 2
        %v665 = vadd.f32 %v663, %v664
        %v666 = vrot.slane %v665, 1
        %v667 = vadd.f32 %v665, %v666
        %v668 = vsel %vm618, %v169, 0.0
        %v669 = vrot.slane %v668, 4
        %v670 = vadd.f32 %v668, %v669
        %v671 = vrot.slane %v670, 2
        %v672 = vadd.f32 %v670, %v671
        %v673 = vrot.slane %v672, 1
        %v674 = vadd.f32 %v672, %v673
        %v675 = vmul.f32 %v162, %v625
        %v676 = vmul.f32 %v163, %v632
        %v677 = vmul.f32 %v164, %v639
        %v678 = vmul.f32 %v165, %v646
        %v679 = vmul.f32 %v166, %v653
        %v680 = vmul.f32 %v167, %v660
        %v681 = vmul.f32 %v168, %v667
        %v682 = vmul.f32 %v169, %v674
        %691 = vrot.lane.b32.xlu0 %v675, 111
        %v692 = vpop.permute.xlu0 %691
        %693 = vrot.lane.b32.xlu0 %v676, 111
        %v694 = vpop.permute.xlu0 %693
        %695 = vrot.lane.b32.xlu0 %v677, 111
        %v696 = vpop.permute.xlu0 %695
        %697 = vrot.lane.b32.xlu0 %v678, 111
        %v698 = vpop.permute.xlu0 %697
        %699 = vrot.lane.b32.xlu0 %v679, 111
        %v700 = vpop.permute.xlu0 %699
        %701 = vrot.lane.b32.xlu0 %v680, 111
        %v702 = vpop.permute.xlu0 %701
        %703 = vrot.lane.b32.xlu0 %v681, 111
        %v704 = vpop.permute.xlu0 %703
        %705 = vrot.lane.b32.xlu0 %v682, 111
        %v706 = vpop.permute.xlu0 %705
        %vm715 = vcmask 261120
        %v716 = vsel %vm715, %v692, 0.0
        %717 = vadd.xlane.f32.xlu0 %v716
        %v718 = vpop.xlane.xlu0 %717
        %v719 = vsel %vm715, %v694, 0.0
        %720 = vadd.xlane.f32.xlu0 %v719
        %v721 = vpop.xlane.xlu0 %720
        %v722 = vsel %vm715, %v696, 0.0
        %723 = vadd.xlane.f32.xlu0 %v722
        %v724 = vpop.xlane.xlu0 %723
        %v725 = vsel %vm715, %v698, 0.0
        %726 = vadd.xlane.f32.xlu0 %v725
        %v727 = vpop.xlane.xlu0 %726
        %v728 = vsel %vm715, %v700, 0.0
        %729 = vadd.xlane.f32.xlu0 %v728
        %v730 = vpop.xlane.xlu0 %729
        %v731 = vsel %vm715, %v702, 0.0
        %732 = vadd.xlane.f32.xlu0 %v731
        %v733 = vpop.xlane.xlu0 %732
        %v734 = vsel %vm715, %v704, 0.0
        %735 = vadd.xlane.f32.xlu0 %v734
        %v736 = vpop.xlane.xlu0 %735
        %v737 = vsel %vm715, %v706, 0.0
        %738 = vadd.xlane.f32.xlu0 %v737
        %v739 = vpop.xlane.xlu0 %738
        %v748 = vlaneseq
        %v749 = vand.u32 %v748, 127
        %v750 = vlaneseq
        %v751 = vshrl.u32 %v750, 7
        %v752 = vsub.s32 %v749, %v751
        %v753 = vrot.slane %v718, %v752
        %v754 = vlaneseq
        %v755 = vshrl.u32 %v754, 7
        %v756 = vsub.s32 %v749, %v755
        %v757 = vrot.slane %v721, %v756
        %v758 = vlaneseq
        %v759 = vshrl.u32 %v758, 7
        %v760 = vsub.s32 %v749, %v759
        %v761 = vrot.slane %v724, %v760
        %v762 = vlaneseq
        %v763 = vshrl.u32 %v762, 7
        %v764 = vsub.s32 %v749, %v763
        %v765 = vrot.slane %v727, %v764
        %v766 = vlaneseq
        %v767 = vshrl.u32 %v766, 7
        %v768 = vsub.s32 %v749, %v767
        %v769 = vrot.slane %v730, %v768
        %v770 = vlaneseq
        %v771 = vshrl.u32 %v770, 7
        %v772 = vsub.s32 %v749, %v771
        %v773 = vrot.slane %v733, %v772
        %v774 = vlaneseq
        %v775 = vshrl.u32 %v774, 7
        %v776 = vsub.s32 %v749, %v775
        %v777 = vrot.slane %v736, %v776
        %v778 = vlaneseq
        %v779 = vshrl.u32 %v778, 7
        %v780 = vsub.s32 %v749, %v779
        %v781 = vrot.slane %v739, %v780
        %vm782 = vcmask 1041409
        %v783 = vsel %vm782, %v757, %v753
        %vm784 = vcmask 1042434
        %v785 = vsel %vm784, %v761, %v783
        %vm786 = vcmask 1043459
        %v787 = vsel %vm786, %v765, %v785
        %vm788 = vcmask 1044484
        %v789 = vsel %vm788, %v769, %v787
        %vm790 = vcmask 1045509
        %v791 = vsel %vm790, %v773, %v789
        %vm792 = vcmask 1046534
        %v793 = vsel %vm792, %v777, %v791
        %vm794 = vcmask 1047559
        %v795 = vsel %vm794, %v781, %v793
        %v797 = vsel %vm339, %v795, -inf
        %798 = vmax.xlane.f32.xlu0 %v797
        %v799 = vpop.xlane.xlu0 %798
        %v801 = vlaneseq
        %v802 = vshrl.u32 %v801, 7
        %v803 = vsub.s32 0, %v802
        %v804 = vrot.slane %v799, %v803
        %v805 = vlaneseq
        %v806 = vshrl.u32 %v805, 7
        %v807 = vsub.s32 1, %v806
        %v808 = vrot.slane %v799, %v807
        %v809 = vlaneseq
        %v810 = vshrl.u32 %v809, 7
        %v811 = vsub.s32 2, %v810
        %v812 = vrot.slane %v799, %v811
        %v813 = vlaneseq
        %v814 = vshrl.u32 %v813, 7
        %v815 = vsub.s32 3, %v814
        %v816 = vrot.slane %v799, %v815
        %v817 = vlaneseq
        %v818 = vshrl.u32 %v817, 7
        %v819 = vsub.s32 4, %v818
        %v820 = vrot.slane %v799, %v819
        %v821 = vlaneseq
        %v822 = vshrl.u32 %v821, 7
        %v823 = vsub.s32 5, %v822
        %v824 = vrot.slane %v799, %v823
        %v825 = vlaneseq
        %v826 = vshrl.u32 %v825, 7
        %v827 = vsub.s32 6, %v826
        %v828 = vrot.slane %v799, %v827
        %v829 = vlaneseq
        %v830 = vshrl.u32 %v829, 7
        %v831 = vsub.s32 7, %v830
        %v832 = vrot.slane %v799, %v831
        %v841 = vsub.f32 %v718, %v804
        %v842 = vsub.f32 %v721, %v808
        %v843 = vsub.f32 %v724, %v812
        %v844 = vsub.f32 %v727, %v816
        %v845 = vsub.f32 %v730, %v820
        %v846 = vsub.f32 %v733, %v824
        %v847 = vsub.f32 %v736, %v828
        %v848 = vsub.f32 %v739, %v832
        %v849 = vmul.f32 %v841, 1.442695
        %v850 = vpow.pop %v849
        %v851 = vmul.f32 %v842, 1.442695
        %v852 = vpow.pop %v851
        %v853 = vmul.f32 %v843, 1.442695
        %v854 = vpow.pop %v853
        %v855 = vmul.f32 %v844, 1.442695
        %v856 = vpow.pop %v855
        %v857 = vmul.f32 %v845, 1.442695
        %v858 = vpow.pop %v857
        %v859 = vmul.f32 %v846, 1.442695
        %v860 = vpow.pop %v859
        %v861 = vmul.f32 %v847, 1.442695
        %v862 = vpow.pop %v861
        %v863 = vmul.f32 %v848, 1.442695
        %v864 = vpow.pop %v863
        %873 = vset.pattern.permute.xlu0 0
        %874 = vperm.xlu0 %873, %v850
        %v875 = vpop.permute.xlu0 %874
        %876 = vset.pattern.permute.xlu0 0
        %877 = vperm.xlu0 %876, %v852
        %v878 = vpop.permute.xlu0 %877
        %879 = vset.pattern.permute.xlu0 0
        %880 = vperm.xlu0 %879, %v854
        %v881 = vpop.permute.xlu0 %880
        %882 = vset.pattern.permute.xlu0 0
        %883 = vperm.xlu0 %882, %v856
        %v884 = vpop.permute.xlu0 %883
        %885 = vset.pattern.permute.xlu0 0
        %886 = vperm.xlu0 %885, %v858
        %v887 = vpop.permute.xlu0 %886
        %888 = vset.pattern.permute.xlu0 0
        %889 = vperm.xlu0 %888, %v860
        %v890 = vpop.permute.xlu0 %889
        %891 = vset.pattern.permute.xlu0 0
        %892 = vperm.xlu0 %891, %v862
        %v893 = vpop.permute.xlu0 %892
        %894 = vset.pattern.permute.xlu0 0
        %895 = vperm.xlu0 %894, %v864
        %v896 = vpop.permute.xlu0 %895
        %v897 = vlaneseq
        %v898 = vshrl.u32 %v897, 7
        %v899 = vsub.s32 %v749, %v898
        %v900 = vrot.slane %v875, %v899
        %v901 = vlaneseq
        %v902 = vshrl.u32 %v901, 7
        %v903 = vsub.s32 %v749, %v902
        %v904 = vrot.slane %v878, %v903
        %v905 = vlaneseq
        %v906 = vshrl.u32 %v905, 7
        %v907 = vsub.s32 %v749, %v906
        %v908 = vrot.slane %v881, %v907
        %v909 = vlaneseq
        %v910 = vshrl.u32 %v909, 7
        %v911 = vsub.s32 %v749, %v910
        %v912 = vrot.slane %v884, %v911
        %v913 = vlaneseq
        %v914 = vshrl.u32 %v913, 7
        %v915 = vsub.s32 %v749, %v914
        %v916 = vrot.slane %v887, %v915
        %v917 = vlaneseq
        %v918 = vshrl.u32 %v917, 7
        %v919 = vsub.s32 %v749, %v918
        %v920 = vrot.slane %v890, %v919
        %v921 = vlaneseq
        %v922 = vshrl.u32 %v921, 7
        %v923 = vsub.s32 %v749, %v922
        %v924 = vrot.slane %v893, %v923
        %v925 = vlaneseq
        %v926 = vshrl.u32 %v925, 7
        %v927 = vsub.s32 %v749, %v926
        %v928 = vrot.slane %v896, %v927
        %v929 = vsel %vm782, %v904, %v900
        %v930 = vsel %vm784, %v908, %v929
        %v931 = vsel %vm786, %v912, %v930
        %v932 = vsel %vm788, %v916, %v931
        %v933 = vsel %vm790, %v920, %v932
        %v934 = vsel %vm792, %v924, %v933
        %v935 = vsel %vm794, %v928, %v934
        %v937 = vsel %vm339, %v935, 0.0
        %938 = vadd.xlane.f32.xlu0 %v937
        %v939 = vpop.xlane.xlu0 %938
        %v941 = vlaneseq
        %v942 = vshrl.u32 %v941, 7
        %v943 = vsub.s32 0, %v942
        %v944 = vrot.slane %v939, %v943
        %v945 = vlaneseq
        %v946 = vshrl.u32 %v945, 7
        %v947 = vsub.s32 1, %v946
        %v948 = vrot.slane %v939, %v947
        %v949 = vlaneseq
        %v950 = vshrl.u32 %v949, 7
        %v951 = vsub.s32 2, %v950
        %v952 = vrot.slane %v939, %v951
        %v953 = vlaneseq
        %v954 = vshrl.u32 %v953, 7
        %v955 = vsub.s32 3, %v954
        %v956 = vrot.slane %v939, %v955
        %v957 = vlaneseq
        %v958 = vshrl.u32 %v957, 7
        %v959 = vsub.s32 4, %v958
        %v960 = vrot.slane %v939, %v959
        %v961 = vlaneseq
        %v962 = vshrl.u32 %v961, 7
        %v963 = vsub.s32 5, %v962
        %v964 = vrot.slane %v939, %v963
        %v965 = vlaneseq
        %v966 = vshrl.u32 %v965, 7
        %v967 = vsub.s32 6, %v966
        %v968 = vrot.slane %v939, %v967
        %v969 = vlaneseq
        %v970 = vshrl.u32 %v969, 7
        %v971 = vsub.s32 7, %v970
        %v972 = vrot.slane %v939, %v971
        %v981 = vrcp.pop %v944
        %v982 = vmul.f32 %v850, %v981
        %v983 = vrcp.pop %v948
        %v984 = vmul.f32 %v852, %v983
        %v985 = vrcp.pop %v952
        %v986 = vmul.f32 %v854, %v985
        %v987 = vrcp.pop %v956
        %v988 = vmul.f32 %v856, %v987
        %v989 = vrcp.pop %v960
        %v990 = vmul.f32 %v858, %v989
        %v991 = vrcp.pop %v964
        %v992 = vmul.f32 %v860, %v991
        %v993 = vrcp.pop %v968
        %v994 = vmul.f32 %v862, %v993
        %v995 = vrcp.pop %v972
        %v996 = vmul.f32 %v864, %v995
        %1005 = vrot.lane.b32.xlu0 %v610, 116
        %v1006 = vpop.permute.xlu0 %1005
        %1007 = vrot.lane.b32.xlu0 %v611, 116
        %v1008 = vpop.permute.xlu0 %1007
        %1009 = vrot.lane.b32.xlu0 %v612, 116
        %v1010 = vpop.permute.xlu0 %1009
        %1011 = vrot.lane.b32.xlu0 %v613, 116
        %v1012 = vpop.permute.xlu0 %1011
        %1013 = vrot.lane.b32.xlu0 %v614, 116
        %v1014 = vpop.permute.xlu0 %1013
        %1015 = vrot.lane.b32.xlu0 %v615, 116
        %v1016 = vpop.permute.xlu0 %1015
        %1017 = vrot.lane.b32.xlu0 %v616, 116
        %v1018 = vpop.permute.xlu0 %1017
        %1019 = vrot.lane.b32.xlu0 %v617, 116
        %v1020 = vpop.permute.xlu0 %1019
        %v1029 = vmul.f32 %v982, %v1006
        %v1030 = vmul.f32 %v984, %v1008
        %v1031 = vmul.f32 %v986, %v1010
        %v1032 = vmul.f32 %v988, %v1012
        %v1033 = vmul.f32 %v990, %v1014
        %v1034 = vmul.f32 %v992, %v1016
        %v1035 = vmul.f32 %v994, %v1018
        %v1036 = vmul.f32 %v996, %v1020
        %1045 = vset.pattern.permute.xlu0 0
        %1046 = vperm.xlu0 %1045, %v1029
        %v1047 = vpop.permute.xlu0 %1046
        %1048 = vset.pattern.permute.xlu0 0
        %1049 = vperm.xlu0 %1048, %v1030
        %v1050 = vpop.permute.xlu0 %1049
        %1051 = vset.pattern.permute.xlu0 0
        %1052 = vperm.xlu0 %1051, %v1031
        %v1053 = vpop.permute.xlu0 %1052
        %1054 = vset.pattern.permute.xlu0 0
        %1055 = vperm.xlu0 %1054, %v1032
        %v1056 = vpop.permute.xlu0 %1055
        %1057 = vset.pattern.permute.xlu0 0
        %1058 = vperm.xlu0 %1057, %v1033
        %v1059 = vpop.permute.xlu0 %1058
        %1060 = vset.pattern.permute.xlu0 0
        %1061 = vperm.xlu0 %1060, %v1034
        %v1062 = vpop.permute.xlu0 %1061
        %1063 = vset.pattern.permute.xlu0 0
        %1064 = vperm.xlu0 %1063, %v1035
        %v1065 = vpop.permute.xlu0 %1064
        %1066 = vset.pattern.permute.xlu0 0
        %1067 = vperm.xlu0 %1066, %v1036
        %v1068 = vpop.permute.xlu0 %1067
        %v1069 = vlaneseq
        %v1070 = vshrl.u32 %v1069, 7
        %v1071 = vsub.s32 %v749, %v1070
        %v1072 = vrot.slane %v1047, %v1071
        %v1073 = vlaneseq
        %v1074 = vshrl.u32 %v1073, 7
        %v1075 = vsub.s32 %v749, %v1074
        %v1076 = vrot.slane %v1050, %v1075
        %v1077 = vlaneseq
        %v1078 = vshrl.u32 %v1077, 7
        %v1079 = vsub.s32 %v749, %v1078
        %v1080 = vrot.slane %v1053, %v1079
        %v1081 = vlaneseq
        %v1082 = vshrl.u32 %v1081, 7
        %v1083 = vsub.s32 %v749, %v1082
        %v1084 = vrot.slane %v1056, %v1083
        %v1085 = vlaneseq
        %v1086 = vshrl.u32 %v1085, 7
        %v1087 = vsub.s32 %v749, %v1086
        %v1088 = vrot.slane %v1059, %v1087
        %v1089 = vlaneseq
        %v1090 = vshrl.u32 %v1089, 7
        %v1091 = vsub.s32 %v749, %v1090
        %v1092 = vrot.slane %v1062, %v1091
        %v1093 = vlaneseq
        %v1094 = vshrl.u32 %v1093, 7
        %v1095 = vsub.s32 %v749, %v1094
        %v1096 = vrot.slane %v1065, %v1095
        %v1097 = vlaneseq
        %v1098 = vshrl.u32 %v1097, 7
        %v1099 = vsub.s32 %v749, %v1098
        %v1100 = vrot.slane %v1068, %v1099
        %v1101 = vsel %vm782, %v1076, %v1072
        %v1102 = vsel %vm784, %v1080, %v1101
        %v1103 = vsel %vm786, %v1084, %v1102
        %v1104 = vsel %vm788, %v1088, %v1103
        %v1105 = vsel %vm790, %v1092, %v1104
        %v1106 = vsel %vm792, %v1096, %v1105
        %v1107 = vsel %vm794, %v1100, %v1106
        %v1109 = vsel %vm339, %v1107, 0.0
        %1110 = vadd.xlane.f32.xlu0 %v1109
        %v1111 = vpop.xlane.xlu0 %1110
        %v1112 = vxor.u32 %v1111, 2147483648
        %v1113 = vmul.f32 %v1112, 1.442695
        %v1114 = vpow.pop %v1113
        %v1115 = vadd.f32 %v1114, 1.0
        %v1116 = vrcp.pop %v1115
        %v1117 = vmul.f32 1.0, %v1116
        %v1119 = vlaneseq
        %v1120 = vshrl.u32 %v1119, 7
        %v1121 = vsub.s32 %v749, %v1120
        %v1122 = vrot.slane %v1117, %v1121
        %vm1124 = vcmask 57344
        %1125 = vst.msk [vmem:[%s160] sm:$0x1] %vm1124, %v1122
        %s1126 = sand.u32 %s74, 1
        %s1127 = scalar_lea.sflag [#allocation4], %s1126
        %s1128 = sand.u32 %s74, 1
        %s1129 = scalar_lea.vmem [#allocation5], %s1128
        // Predicated region
        $region33: #{tpu_custom_call.1} parent=27 // pred_check
          %p1130 = pneg %p84
        $region34: #{tpu_custom_call.1} parent=27 // pred_check_branch
          %1132 = sbr.rel (%p1130) target = $region36
        $region35: #{tpu_custom_call.1} parent=27 // pred_region
          %s1134 = ssub.s32 16, 16
          %1135 = vsyncadd %s1127, %s1134
          %s1136 = smul.addr %s19, 16
          %s1137 = scalar_lea.hbm %s2, %s1136
          %s1139 = sshll.u32 %s1129, 4
          %s1140 = int_to_ptr.vmem [resolvable:$true] %s1139
          %1142 = dma.vmem_to_hbm [thread:$0]  %s1140, 16, %s1137, %s1127
        $region36: #{tpu_custom_call.1} parent=27 // pred_fallthru
          _
      $region28: #{tpu_custom_call.1} parent=5 // pred_fallthru
        _
      %p1143 = scmp.le.s32.totalorder 2, %s14
      // Predicated region
      $region37: #{tpu_custom_call.1} parent=5 // pred_check
        %p1144 = pneg %p1143
      $region38: #{tpu_custom_call.1} parent=5 // pred_check_branch
        %1146 = sbr.rel (%p1144) target = $region40
      $region39: #{tpu_custom_call.1} parent=5 // pred_region
        %s1147 = ssub.s32 %s14, 2
        // Predicated region
        $region41: #{tpu_custom_call.1} parent=39 // pred_check
          %p1148 = pneg %p90
        $region42: #{tpu_custom_call.1} parent=39 // pred_check_branch
          %1150 = sbr.rel (%p1148) target = $region44
        $region43: #{tpu_custom_call.1} parent=39 // pred_region
          %s1151 = sand.u32 %s75, 1
          %s1152 = scalar_lea.sflag [#allocation4], %s1151
          %s1153 = sand.u32 %s75, 1
          %s1154 = scalar_lea.vmem [#allocation5], %s1153
          %1155 = dma.done %s1152, 16
        $region44: #{tpu_custom_call.1} parent=39 // pred_fallthru
          _
      $region40: #{tpu_custom_call.1} parent=5 // pred_fallthru
        _
    $region6: #{tpu_custom_call.1} parent=1 // loop_footer
      %s18 = sadd.s32 1, %s14
    $region7: #{tpu_custom_call.1} parent=1 // loop_footer_branch
      %13 = sbr.rel target = $region3
    $region8: #{tpu_custom_call.1} parent=1 // loop_exit
      _
    %1156 = vsyncpa [#allocation3], 1
    %s1157 = scalar_lea.sflag [#allocation3], 1
    %1158 = vsyncpa %s1157, 1
    %1159 = vsyncpa [#allocation4], 1
    %s1160 = scalar_lea.sflag [#allocation4], 1
    %1161 = vsyncpa %s1160, 1

</llo_original>
